<compile_context>
chip_gen: v5e
topology: v5e:2x2
jax: 0.10.0
libtpu: 0.0.40
codegen_flags: <defaults>
</compile_context>

<pallas_src>
import functools

import jax
import jax.numpy as jnp
from jax import lax
from jax.experimental import pallas as pl
from jax.experimental.pallas import tpu as pltpu

# Module-level constants from the reference implementation.
GAIN_PHI = 1.0
GAIN_PSI = 1.0
OFFSET_PHI = 0.0
OFFSET_PSI = 2.0

_LANE = 128
_SUBLANE = 8


def _round_up(a, b):
    return ((a + b - 1) // b) * b


def _affine(v, gain, offset):
    """gain * (v - offset) with constants folded at trace time."""
    bias = gain * offset
    if gain != 1.0:
        v = v * gain
    if bias != 0.0:
        v = v - bias
    return v


def _build_model_kernel(x_ref, u_ref, w_ref, k_ref, y_ref, z_ref,
                        *, gain_psi, offset_psi, gain_phi, offset_phi):
    """One batch tile: two MXU matmuls + VPU/EUP sigmoids, all in f32."""
    x = x_ref[...]        # (TB, N1)
    u = u_ref[...]        # (N2p, N1)   -- original nn.Linear layout, zero-padded
    w = w_ref[...]        # (N3p, N2p)  -- original nn.Linear layout, zero-padded

    # k = x @ U.T  (contract last dims of both operands; no host transpose).
    k = lax.dot_general(x, u, (((1,), (1,)), ((), ())),
                        preferred_element_type=jnp.float32)
    k_ref[...] = k.astype(k_ref.dtype)

    # y = sigmoid(gain_psi * (k - offset_psi))
    y = jax.nn.sigmoid(_affine(k, gain_psi, offset_psi))
    y_ref[...] = y.astype(y_ref.dtype)

    # h = y @ W.T ; z = sigmoid(gain_phi * (h - offset_phi))
    h = lax.dot_general(y, w, (((1,), (1,)), ((), ())),
                        preferred_element_type=jnp.float32)
    z = jax.nn.sigmoid(_affine(h, gain_phi, offset_phi))
    z_ref[...] = z.astype(z_ref.dtype)


def build_model_forward(x, U_weight, W_weight,
                        gain_psi=GAIN_PSI, offset_psi=OFFSET_PSI,
                        gain_phi=GAIN_PHI, offset_phi=OFFSET_PHI,
                        batch_tile=256):
    """Pallas equivalent of BuildModel.forward.

    Args:
      x:        (B, N1) float32
      U_weight: (N2, N1) float32  -- same layout as torch nn.Linear(N1, N2).weight
      W_weight: (N3, N2) float32  -- same layout as torch nn.Linear(N2, N3).weight
    Returns:
      (k, y, z) with shapes (B, N2), (B, N2), (B, N3).
    """
    B, N1 = x.shape
    N2 = U_weight.shape[0]
    N3 = W_weight.shape[0]

    # Lane-dense padded widths (multiples of 128) so output stores are unmasked
    # and the MXU columns are filled.
    N2p = _round_up(N2, _LANE)
    N3p = _round_up(N3, _LANE)

    # Zero-pad the weights once per call (padded rows/cols are exactly zero, so
    # they contribute nothing to the real outputs).  If the weights are static
    # in the caller, this pad can be hoisted outside the per-call path.
    U_p = U_weight if N2p == N2 else jnp.pad(U_weight, ((0, N2p - N2), (0, 0)))
    if N3p == N3 and N2p == N2:
        W_p = W_weight
    else:
        W_p = jnp.pad(W_weight, ((0, N3p - N3), (0, N2p - N2)))

    # Batch tile: multiple of 8 sublanes, capped so double-buffered
    # x/k/y/z tiles plus both resident weight blocks stay far under the
    # v7x 64 MiB VMEM ceiling (and v5e's 16 MiB scoped default).
    TB = min(_round_up(B, _SUBLANE), int(batch_tile))
    grid = (pl.cdiv(B, TB),)

    kernel = functools.partial(
        _build_model_kernel,
        gain_psi=float(gain_psi), offset_psi=float(offset_psi),
        gain_phi=float(gain_phi), offset_phi=float(offset_phi))

    out_shapes = (
        jax.ShapeDtypeStruct((B, N2p), jnp.float32),  # k (padded)
        jax.ShapeDtypeStruct((B, N2p), jnp.float32),  # y (padded)
        jax.ShapeDtypeStruct((B, N3p), jnp.float32),  # z (padded)
    )

    cost = pl.CostEstimate(
        flops=2 * B * N1 * N2p + 2 * B * N2p * N3p,
        transcendentals=B * (N2p + N3p),
        bytes_accessed=4 * (B * N1 + N2p * N1 + N3p * N2p
                            + 2 * B * N2p + B * N3p),
    )

    k_p, y_p, z_p = pl.pallas_call(
        kernel,
        out_shape=out_shapes,
        grid=grid,
        in_specs=[
            # x: pipelined over the batch grid.
            pl.BlockSpec((TB, N1), lambda i: (i, 0)),
            # Weights: full extent, constant index_map -> resident across steps.
            pl.BlockSpec((N2p, N1), lambda i: (0, 0)),
            pl.BlockSpec((N3p, N2p), lambda i: (0, 0)),
        ],
        out_specs=(
            pl.BlockSpec((TB, N2p), lambda i: (i, 0)),
            pl.BlockSpec((TB, N2p), lambda i: (i, 0)),
            pl.BlockSpec((TB, N3p), lambda i: (i, 0)),
        ),
        compiler_params=pltpu.CompilerParams(
            dimension_semantics=("parallel",)),
        cost_estimate=cost,
    )(x, U_p, W_p)

    # Slice the lane padding back off.
    return k_p[:, :N2], y_p[:, :N2], z_p[:, :N3]


def _reference_forward(x, U_weight, W_weight):
    """Pure-JAX reference mirroring the PyTorch module."""
    k = x @ U_weight.T
    y = jax.nn.sigmoid(GAIN_PSI * (k - OFFSET_PSI))
    h = y @ W_weight.T
    z = jax.nn.sigmoid(GAIN_PHI * (h - OFFSET_PHI))
    return k, y, z


if __name__ == "__main__":
    # Small shapes consistent with BuildModel(N1, N2, N3) on a 2-D input.
    B, N1, N2, N3 = 8, 32, 64, 16

    key = jax.random.PRNGKey(0)
    kx, ku, kw = jax.random.split(key, 3)

    x = jax.random.normal(kx, (B, N1), dtype=jnp.float32)
    # Deterministic "nn.Linear"-style weights (uniform in +/- 1/sqrt(fan_in)).
    U_weight = jax.random.uniform(ku, (N2, N1), dtype=jnp.float32,
                                  minval=-1.0, maxval=1.0) / jnp.sqrt(N1)
    W_weight = jax.random.uniform(kw, (N3, N2), dtype=jnp.float32,
                                  minval=-1.0, maxval=1.0) / jnp.sqrt(N2)

    k, y, z = jax.block_until_ready(build_model_forward(x, U_weight, W_weight))

    k_ref, y_ref, z_ref = _reference_forward(x, U_weight, W_weight)
    assert k.shape == (B, N2) and y.shape == (B, N2) and z.shape == (B, N3)
    assert jnp.allclose(k, k_ref, atol=1e-5, rtol=1e-5)
    assert jnp.allclose(y, y_ref, atol=1e-5, rtol=1e-5)
    assert jnp.allclose(z, z_ref, atol=1e-5, rtol=1e-5)

    print("KERNEL_OK")
</pallas_src>

<mosaic_0001>
module attributes {stable_mosaic.version = 11 : i64} {
  func.func @_build_model_kernel(%arg0: i32, %arg1: memref<8x32xf32, #tpu.memory_space<vmem>>, %arg2: memref<128x32xf32, #tpu.memory_space<vmem>>, %arg3: memref<128x128xf32, #tpu.memory_space<vmem>>, %arg4: memref<8x128xf32, #tpu.memory_space<vmem>>, %arg5: memref<8x128xf32, #tpu.memory_space<vmem>>, %arg6: memref<8x128xf32, #tpu.memory_space<vmem>>) attributes {dimension_semantics = [#tpu.dimension_semantics<parallel>], iteration_bounds = array<i64: 1>, scalar_prefetch = 0 : i64, scratch_operands = 0 : i64, tpu.core_type = #tpu.core_type<tc>, window_params = [{transform_indices = @transform_0, window_bounds = array<i64: 8, 32>}, {pipeline_mode = #tpu.pipeline_mode<synchronous>, transform_indices = @transform_1, window_bounds = array<i64: 128, 32>}, {pipeline_mode = #tpu.pipeline_mode<synchronous>, transform_indices = @transform_2, window_bounds = array<i64: 128, 128>}, {transform_indices = @transform_3, window_bounds = array<i64: 8, 128>}, {transform_indices = @transform_4, window_bounds = array<i64: 8, 128>}, {transform_indices = @transform_5, window_bounds = array<i64: 8, 128>}]} {
    %c0 = arith.constant 0 : index
    %c0_0 = arith.constant 0 : index
    %0 = vector.load %arg1[%c0, %c0_0] : memref<8x32xf32, #tpu.memory_space<vmem>>, vector<8x32xf32>
    %c0_1 = arith.constant 0 : index
    %c0_2 = arith.constant 0 : index
    %1 = vector.load %arg2[%c0_1, %c0_2] : memref<128x32xf32, #tpu.memory_space<vmem>>, vector<128x32xf32>
    %c0_3 = arith.constant 0 : index
    %c0_4 = arith.constant 0 : index
    %2 = vector.load %arg3[%c0_3, %c0_4] : memref<128x128xf32, #tpu.memory_space<vmem>>, vector<128x128xf32>
    %cst = arith.constant dense<0.000000e+00> : vector<8x128xf32>
    %3 = tpu.matmul %0, %1, %cst {dimension_numbers = #tpu.dot_dimension_numbers<[1], [1], [0], [0], [0, 0, 1, 0], [], []>} : vector<8x32xf32>, vector<128x32xf32>, vector<8x128xf32> -> vector<8x128xf32>
    %c0_5 = arith.constant 0 : index
    %c0_6 = arith.constant 0 : index
    %4 = vector.load %arg4[%c0_5, %c0_6] : memref<8x128xf32, #tpu.memory_space<vmem>>, vector<8x128xf32>
    tpu.vector_store %arg4[%c0_5, %c0_6], %3 {strides = array<i32>} : memref<8x128xf32, #tpu.memory_space<vmem>>, vector<8x128xf32>,
    %cst_7 = arith.constant 2.000000e+00 : f32
    %5 = vector.broadcast %cst_7 : f32 to vector<8x128xf32>
    %6 = arith.subf %3, %5 : vector<8x128xf32>
    %7 = arith.negf %6 : vector<8x128xf32>
    %8 = math.exp %7 : vector<8x128xf32>
    %cst_8 = arith.constant 1.000000e+00 : f32
    %9 = vector.broadcast %cst_8 : f32 to vector<8x128xf32>
    %10 = arith.addf %9, %8 : vector<8x128xf32>
    %11 = arith.divf %9, %10 : vector<8x128xf32>
    %c0_9 = arith.constant 0 : index
    %c0_10 = arith.constant 0 : index
    %12 = vector.load %arg5[%c0_9, %c0_10] : memref<8x128xf32, #tpu.memory_space<vmem>>, vector<8x128xf32>
    tpu.vector_store %arg5[%c0_9, %c0_10], %11 {strides = array<i32>} : memref<8x128xf32, #tpu.memory_space<vmem>>, vector<8x128xf32>,
    %cst_11 = arith.constant dense<0.000000e+00> : vector<8x128xf32>
    %13 = tpu.matmul %11, %2, %cst_11 {dimension_numbers = #tpu.dot_dimension_numbers<[1], [1], [0], [0], [0, 0, 1, 0], [], []>} : vector<8x128xf32>, vector<128x128xf32>, vector<8x128xf32> -> vector<8x128xf32>
    %14 = arith.negf %13 : vector<8x128xf32>
    %15 = math.exp %14 : vector<8x128xf32>
    %cst_12 = arith.constant 1.000000e+00 : f32
    %16 = vector.broadcast %cst_12 : f32 to vector<8x128xf32>
    %17 = arith.addf %16, %15 : vector<8x128xf32>
    %18 = arith.divf %16, %17 : vector<8x128xf32>
    %c0_13 = arith.constant 0 : index
    %c0_14 = arith.constant 0 : index
    %19 = vector.load %arg6[%c0_13, %c0_14] : memref<8x128xf32, #tpu.memory_space<vmem>>, vector<8x128xf32>
    tpu.vector_store %arg6[%c0_13, %c0_14], %18 {strides = array<i32>} : memref<8x128xf32, #tpu.memory_space<vmem>>, vector<8x128xf32>,
    return
  }
  func.func @transform_0(%arg0: i32) -> (i32, i32) {
    %c0_i32 = arith.constant 0 : i32
    %c0_i32_0 = arith.constant 0 : i32
    return %arg0, %c0_i32 : i32, i32
  }
  func.func @transform_1(%arg0: i32) -> (i32, i32) {
    %c0_i32 = arith.constant 0 : i32
    %c0_i32_0 = arith.constant 0 : i32
    %c0_i32_1 = arith.constant 0 : i32
    return %c0_i32, %c0_i32_0 : i32, i32
  }
  func.func @transform_2(%arg0: i32) -> (i32, i32) {
    %c0_i32 = arith.constant 0 : i32
    %c0_i32_0 = arith.constant 0 : i32
    %c0_i32_1 = arith.constant 0 : i32
    return %c0_i32, %c0_i32_0 : i32, i32
  }
  func.func @transform_3(%arg0: i32) -> (i32, i32) {
    %c0_i32 = arith.constant 0 : i32
    %c0_i32_0 = arith.constant 0 : i32
    return %arg0, %c0_i32 : i32, i32
  }
  func.func @transform_4(%arg0: i32) -> (i32, i32) {
    %c0_i32 = arith.constant 0 : i32
    %c0_i32_0 = arith.constant 0 : i32
    return %arg0, %c0_i32 : i32, i32
  }
  func.func @transform_5(%arg0: i32) -> (i32, i32) {
    %c0_i32 = arith.constant 0 : i32
    %c0_i32_0 = arith.constant 0 : i32
    return %arg0, %c0_i32 : i32, i32
  }
}

</mosaic_0001>

<llo_original>
// kernel: tpu_custom_call.1
$region0: #{tpu_custom_call.1}
  #allocation0 [shape = 'u32[]', space=smem, size = 0x4, offset = 0x4, fixed_abs, tag = 'smem constant byte address 0x4 - core index']
  #allocation1 [shape = 'u32[72,128]{1,0:T(1,128)}', space=vmem, size = 0x9000, scoped, tag = 'internal scratch']
  %s0 = inlined_call_operand.vmem [shape: f32[8,32], index: 0, kind: input, shape index: {}]
  %s1 = inlined_call_operand.vmem [shape: f32[128,32], index: 1, kind: input, shape index: {}]
  %s2 = inlined_call_operand.vmem [shape: f32[128,128], index: 2, kind: input, shape index: {}]
  %s3 = inlined_call_operand.hbm [shape: f32[8,128], index: 3, kind: output, shape index: {0}]
  %s4 = inlined_call_operand.hbm [shape: f32[8,128], index: 4, kind: output, shape index: {1}]
  %s5 = inlined_call_operand.hbm [shape: f32[8,128], index: 5, kind: output, shape index: {2}]
  %6 = xla_tuple %s3, %s4, %s5
  %s7 = sld [smem:[#allocation0]]
  $region38: #{tpu_custom_call.1} parent=0
    _
  %s9 = ssub.s32 1, %s7
  %s10 = scalar_select 0, %s9, %s7
  $region1: #{tpu_custom_call.1} parent=0
    #allocation2 [shape = 'u8[4096]{0}', space=vmem, size = 0x1000, scoped, tag = 'output window, operand 0, single buffered']
    #allocation3 [shape = 's32[1]{0}', space=sflag, size = 0x4, scoped, tag = 'scoped memory for tpu_custom_call.1']
    #allocation4 [shape = 'u8[4096]{0}', space=vmem, size = 0x1000, scoped, tag = 'output window, operand 1, single buffered']
    #allocation5 [shape = 's32[1]{0}', space=sflag, size = 0x4, scoped, tag = 'scoped memory for tpu_custom_call.1']
    #allocation6 [shape = 'u8[4096]{0}', space=vmem, size = 0x1000, scoped, tag = 'output window, operand 2, single buffered']
    %11 = vsyncpa [#allocation3], 0
    %12 = vsyncpa [#allocation5], 0
    // Predicated region
    $region2: #{tpu_custom_call.1} parent=1 // pred_check
      _
    $region3: #{tpu_custom_call.1} parent=1 // pred_check_branch
      %14 = sbr.rel (0) target = $region5
    $region4: #{tpu_custom_call.1} parent=1 // pred_region
      _
    $region5: #{tpu_custom_call.1} parent=1 // pred_fallthru
      _
    // Predicated region
    $region6: #{tpu_custom_call.1} parent=1 // pred_check
      _
    $region7: #{tpu_custom_call.1} parent=1 // pred_check_branch
      %16 = sbr.rel (0) target = $region9
    $region8: #{tpu_custom_call.1} parent=1 // pred_region
      _
    $region9: #{tpu_custom_call.1} parent=1 // pred_fallthru
      _
    // Predicated region
    $region10: #{tpu_custom_call.1} parent=1 // pred_check
      _
    $region11: #{tpu_custom_call.1} parent=1 // pred_check_branch
      %18 = sbr.rel (0) target = $region13
    $region12: #{tpu_custom_call.1} parent=1 // pred_region
      _
    $region13: #{tpu_custom_call.1} parent=1 // pred_fallthru
      _
    %v19 = vld [vmem:[%s0] sm:$0xff]
    %v20 = vld [vmem:[%s1] sm:$0xff]
    %v21 = vld [vmem:[%s1 + $0x8] sm:$0xff]
    %v22 = vld [vmem:[%s1 + $0x10] sm:$0xff]
    %v23 = vld [vmem:[%s1 + $0x18] sm:$0xff]
    %v24 = vld [vmem:[%s1 + $0x20] sm:$0xff]
    %v25 = vld [vmem:[%s1 + $0x28] sm:$0xff]
    %v26 = vld [vmem:[%s1 + $0x30] sm:$0xff]
    %v27 = vld [vmem:[%s1 + $0x38] sm:$0xff]
    %v28 = vld [vmem:[%s1 + $0x40] sm:$0xff]
    %v29 = vld [vmem:[%s1 + $0x48] sm:$0xff]
    %v30 = vld [vmem:[%s1 + $0x50] sm:$0xff]
    %v31 = vld [vmem:[%s1 + $0x58] sm:$0xff]
    %v32 = vld [vmem:[%s1 + $0x60] sm:$0xff]
    %v33 = vld [vmem:[%s1 + $0x68] sm:$0xff]
    %v34 = vld [vmem:[%s1 + $0x70] sm:$0xff]
    %v35 = vld [vmem:[%s1 + $0x78] sm:$0xff]
    %v36 = vld [vmem:[%s2] sm:$0xff]
    %v37 = vld [vmem:[%s2 + $0x8] sm:$0xff]
    %v38 = vld [vmem:[%s2 + $0x10] sm:$0xff]
    %v39 = vld [vmem:[%s2 + $0x18] sm:$0xff]
    %v40 = vld [vmem:[%s2 + $0x20] sm:$0xff]
    %v41 = vld [vmem:[%s2 + $0x28] sm:$0xff]
    %v42 = vld [vmem:[%s2 + $0x30] sm:$0xff]
    %v43 = vld [vmem:[%s2 + $0x38] sm:$0xff]
    %v44 = vld [vmem:[%s2 + $0x40] sm:$0xff]
    %v45 = vld [vmem:[%s2 + $0x48] sm:$0xff]
    %v46 = vld [vmem:[%s2 + $0x50] sm:$0xff]
    %v47 = vld [vmem:[%s2 + $0x58] sm:$0xff]
    %v48 = vld [vmem:[%s2 + $0x60] sm:$0xff]
    %v49 = vld [vmem:[%s2 + $0x68] sm:$0xff]
    %v50 = vld [vmem:[%s2 + $0x70] sm:$0xff]
    %v51 = vld [vmem:[%s2 + $0x78] sm:$0xff]
    %vm52 = vcmask 261120
    %v54 = vsel %vm52, %v19, 0
    %v57 = vsel %vm52, %v20, 0
    %v60 = vsel %vm52, %v21, 0
    %v63 = vsel %vm52, %v22, 0
    %v66 = vsel %vm52, %v23, 0
    %v69 = vsel %vm52, %v24, 0
    %v72 = vsel %vm52, %v25, 0
    %v75 = vsel %vm52, %v26, 0
    %v78 = vsel %vm52, %v27, 0
    %v81 = vsel %vm52, %v28, 0
    %v84 = vsel %vm52, %v29, 0
    %v87 = vsel %vm52, %v30, 0
    %v90 = vsel %vm52, %v31, 0
    %v93 = vsel %vm52, %v32, 0
    %v96 = vsel %vm52, %v33, 0
    %v99 = vsel %vm52, %v34, 0
    %v102 = vsel %vm52, %v35, 0
    %104 = vmatpush.xpose.msra.mxu0 %v102
    %105 = vmatpush.xpose.msra.mxu0 %v99
    %106 = vmatpush.xpose.msra.mxu0 %v96
    %107 = vmatpush.xpose.msra.mxu0 %v93
    %108 = vmatpush.xpose.msra.mxu0 %v90
    %109 = vmatpush.xpose.msra.mxu0 %v87
    %110 = vmatpush.xpose.msra.mxu0 %v84
    %111 = vmatpush.xpose.msra.mxu0 %v81
    %112 = vmatpush.xpose.msra.mxu0 %v78
    %113 = vmatpush.xpose.msra.mxu0 %v75
    %114 = vmatpush.xpose.msra.mxu0 %v72
    %115 = vmatpush.xpose.msra.mxu0 %v69
    %116 = vmatpush.xpose.msra.mxu0 %v66
    %117 = vmatpush.xpose.msra.mxu0 %v63
    %118 = vmatpush.xpose.msra.mxu0 %v60
    %119 = vmatpush.xpose.msra.mxu0 %v57
    %120 = vmatmul.f32.gmra.mxu0 %v54
    %v121 = vpop.f32.mrf.mxu0
    %v122 = vadd.f32 0.0, %v121
    %123 = vdwg.mxu0
    %124 = vst [vmem:[#allocation2] sm:$0xff] %v122
    %v125 = vsub.f32 %v122, 2.0
    %v126 = vxor.u32 %v125, 2147483648
    %v127 = vmul.f32 %v126, 1.442695
    %v128 = vpow.pop %v127
    %v129 = vadd.f32 %v128, 1.0
    %v130 = vrcp.pop %v129
    %v131 = vmul.f32 %v129, %v130
    %v132 = vsub.f32 1.0, %v131
    %v133 = vmul.f32 %v130, %v132
    %v134 = vadd.f32 %v130, %v133
    %vm135 = vweird.f32 %v129
    %vm136 = vweird.f32 %v130
    %vm137 = vmor %vm135, %vm136
    %v138 = vsel %vm137, %v130, %v134
    %v139 = vand.u32 2147483647, %v129
    %vm140 = vcmp.eq.f32.partialorder %v139, 8.507059e+37
    %v141 = vand.u32 %v129, 2147483648
    %v142 = vor.u32 1.1754944e-38, %v141
    %v143 = vsel %vm140, %v142, %v138
    %v144 = vmul.f32 1.0, %v143
    %145 = vst [vmem:[#allocation4] sm:$0xff] %v144
    %146 = vmatpush.xpose.msra.mxu0 %v51
    %147 = vmatpush.xpose.msra.mxu0 %v50
    %148 = vmatpush.xpose.msra.mxu0 %v49
    %149 = vmatpush.xpose.msra.mxu0 %v48
    %150 = vmatpush.xpose.msra.mxu0 %v47
    %151 = vmatpush.xpose.msra.mxu0 %v46
    %152 = vmatpush.xpose.msra.mxu0 %v45
    %153 = vmatpush.xpose.msra.mxu0 %v44
    %154 = vmatpush.xpose.msra.mxu0 %v43
    %155 = vmatpush.xpose.msra.mxu0 %v42
    %156 = vmatpush.xpose.msra.mxu0 %v41
    %157 = vmatpush.xpose.msra.mxu0 %v40
    %158 = vmatpush.xpose.msra.mxu0 %v39
    %159 = vmatpush.xpose.msra.mxu0 %v38
    %160 = vmatpush.xpose.msra.mxu0 %v37
    %161 = vmatpush.xpose.msra.mxu0 %v36
    %162 = vmatmul.f32.gmra.mxu0 %v144
    %v163 = vpop.f32.mrf.mxu0
    %v164 = vadd.f32 0.0, %v163
    %165 = vdwg.mxu0
    %v166 = vxor.u32 %v164, 2147483648
    %v167 = vmul.f32 %v166, 1.442695
    %v168 = vpow.pop %v167
    %v169 = vadd.f32 %v168, 1.0
    %v170 = vrcp.pop %v169
    %v171 = vmul.f32 %v169, %v170
    %v172 = vsub.f32 1.0, %v171
    %v173 = vmul.f32 %v170, %v172
    %v174 = vadd.f32 %v170, %v173
    %vm175 = vweird.f32 %v169
    %vm176 = vweird.f32 %v170
    %vm177 = vmor %vm175, %vm176
    %v178 = vsel %vm177, %v170, %v174
    %v179 = vand.u32 2147483647, %v169
    %vm180 = vcmp.eq.f32.partialorder %v179, 8.507059e+37
    %v181 = vand.u32 %v169, 2147483648
    %v182 = vor.u32 1.1754944e-38, %v181
    %v183 = vsel %vm180, %v182, %v178
    %v184 = vmul.f32 1.0, %v183
    %185 = vst [vmem:[#allocation6] sm:$0xff] %v184
    // Predicated region
    $region14: #{tpu_custom_call.1} parent=1 // pred_check
      _
    $region15: #{tpu_custom_call.1} parent=1 // pred_check_branch
      %187 = sbr.rel (0) target = $region17
    $region16: #{tpu_custom_call.1} parent=1 // pred_region
      %189 = vsyncadd [#allocation3], 0
      %s191 = sshll.u32 [#allocation2], 4
      %s192 = int_to_ptr.vmem [resolvable:$true] %s191
      %s193 = sshll.u32 %s3, 4
      %s194 = int_to_ptr.hbm [resolvable:$true] %s193
      %196 = dma.vmem_to_hbm [thread:$0]  %s192, 128, %s194, [#allocation3]
    $region17: #{tpu_custom_call.1} parent=1 // pred_fallthru
      _
    // Predicated region
    $region18: #{tpu_custom_call.1} parent=1 // pred_check
      _
    $region19: #{tpu_custom_call.1} parent=1 // pred_check_branch
      %198 = sbr.rel (0) target = $region21
    $region20: #{tpu_custom_call.1} parent=1 // pred_region
      %200 = vsyncadd [#allocation5], 0
      %s202 = sshll.u32 [#allocation4], 4
      %s203 = int_to_ptr.vmem [resolvable:$true] %s202
      %s204 = sshll.u32 %s4, 4
      %s205 = int_to_ptr.hbm [resolvable:$true] %s204
      %207 = dma.vmem_to_hbm [thread:$0]  %s203, 128, %s205, [#allocation5]
    $region21: #{tpu_custom_call.1} parent=1 // pred_fallthru
      _
    // Predicated region
    $region22: #{tpu_custom_call.1} parent=1 // pred_check
      _
    $region23: #{tpu_custom_call.1} parent=1 // pred_check_branch
      %209 = sbr.rel (0) target = $region25
    $region24: #{tpu_custom_call.1} parent=1 // pred_region
      %211 = vsyncadd [#allocation5], 0
      %s213 = sshll.u32 [#allocation6], 4
      %s214 = int_to_ptr.vmem [resolvable:$true] %s213
      %s215 = sshll.u32 %s5, 4
      %s216 = int_to_ptr.hbm [resolvable:$true] %s215
      %218 = dma.vmem_to_hbm [thread:$0]  %s214, 128, %s216, [#allocation5]
    $region25: #{tpu_custom_call.1} parent=1 // pred_fallthru
      _
    // Predicated region
    $region26: #{tpu_custom_call.1} parent=1 // pred_check
      _
    $region27: #{tpu_custom_call.1} parent=1 // pred_check_branch
      %220 = sbr.rel (0) target = $region29
    $region28: #{tpu_custom_call.1} parent=1 // pred_region
      %222 = dma.done [#allocation3], 128
    $region29: #{tpu_custom_call.1} parent=1 // pred_fallthru
      _
    // Predicated region
    $region30: #{tpu_custom_call.1} parent=1 // pred_check
      _
    $region31: #{tpu_custom_call.1} parent=1 // pred_check_branch
      %224 = sbr.rel (0) target = $region33
    $region32: #{tpu_custom_call.1} parent=1 // pred_region
      %226 = dma.done [#allocation5], 128
    $region33: #{tpu_custom_call.1} parent=1 // pred_fallthru
      _
    // Predicated region
    $region34: #{tpu_custom_call.1} parent=1 // pred_check
      _
    $region35: #{tpu_custom_call.1} parent=1 // pred_check_branch
      %228 = sbr.rel (0) target = $region37
    $region36: #{tpu_custom_call.1} parent=1 // pred_region
      %230 = dma.done [#allocation5], 128
    $region37: #{tpu_custom_call.1} parent=1 // pred_fallthru
      _
    %231 = vsyncpa [#allocation3], 1
    %232 = vsyncpa [#allocation5], 1

</llo_original>
